<compile_context>
chip_gen: v5e
topology: v5e:2x2
jax: 0.10.0
libtpu: 0.0.40
codegen_flags: <defaults>
</compile_context>

<pallas_src>
import jax
import jax.numpy as jnp
from jax.experimental import pallas as pl
from jax.experimental.pallas import tpu as pltpu

NEG_SLOPE = 0.2  # LeakyReLU(0.2) used by Conv2dBlock's 'lrelu' activation


def _lrelu(x):
    # leaky relu with slope < 1: max(x, slope*x); stays in x.dtype
    return jnp.maximum(x, NEG_SLOPE * x)


def _round_up(v, m):
    return ((v + m - 1) // m) * m


def _default_pointwise_dtype():
    """bf16 pointwise math on chips with a bf16 VPU (v6e/v7x); f32 on v5e and
    earlier generations (no native bf16 VALU -> unpack/repack emulation)."""
    try:
        kind = jax.devices()[0].device_kind.lower()
    except Exception:
        return jnp.bfloat16
    if any(v in kind for v in ("v2", "v3", "v4", "v5")):
        return jnp.float32
    return jnp.bfloat16


def _sceneflow_kernel(x_ref, t_ref, w0_ref, wh_ref, whead_ref, bhid_ref,
                      bhead_ref, out_f_ref, out_b_ref):
    """One tile of pixels, channels on sublanes / pixels on lanes.

    x_ref:     (1, 3, TP)        f32   xyz channels for TP pixels
    t_ref:     (1, 1, TP)        f32   time channel
    w0_ref:    (W, 4)            bf16  W0^T, columns ordered [t | xyz]
    wh_ref:    (L, W, W)         bf16  hidden weights, each (Cout, Cin)
    whead_ref: (HR, W)           bf16  fused heads: rows 0..O-1 fwd,
                                       rows bwd_off..bwd_off+O-1 bwd, 0 elsewhere
    bhid_ref:  (L+1, W, 1)       pw    per-layer biases (pw = bf16 or f32)
    bhead_ref: (HR, 1)           f32   head biases (aligned like whead rows)
    out_f_ref: (1, O, TP)        f32
    out_b_ref: (1, O, TP)        f32
    """
    n_hidden = wh_ref.shape[0]                 # 3
    out_dim = out_f_ref.shape[1]               # 3
    bwd_off = _round_up(out_dim, 8)            # 8: sublane-aligned bwd head
    pw = bhid_ref.dtype                        # pointwise dtype (bf16 / f32)

    x = x_ref[0].astype(jnp.bfloat16)          # (3, TP)  MXU operand
    t = t_ref[0].astype(pw)                    # (1, TP)

    # ---- layer 0: 4 -> W.  xyz path on the MXU; the single t channel is a
    #      broadcast multiply-add in the pointwise dtype (== W0 @ cat(t, x)).
    h = jnp.dot(w0_ref[:, 1:4], x, preferred_element_type=jnp.float32)   # (W,TP) f32
    h = _lrelu(h.astype(pw) + w0_ref[:, 0:1].astype(pw) * t + bhid_ref[0])

    # ---- hidden layers 1..n_hidden: W -> W.  bf16 MXU operands / f32 acc;
    #      single cast back to pw fused with the bias+lrelu epilogue.
    for i in range(n_hidden):
        z = jnp.dot(wh_ref[i], h.astype(jnp.bfloat16),
                    preferred_element_type=jnp.float32)
        h = _lrelu(z.astype(pw) + bhid_ref[i + 1])

    # ---- fused heads: W -> HR rows in one matmul, f32 epilogue.
    o = jnp.dot(whead_ref[...], h.astype(jnp.bfloat16),
                preferred_element_type=jnp.float32)                      # (HR, TP)
    o = o + bhead_ref[...]

    # 8-sublane-aligned slices -> clean (unshifted) stores for both heads.
    out_f_ref[0] = o[0:out_dim, :].astype(out_f_ref.dtype)
    out_b_ref[0] = o[bwd_off:bwd_off + out_dim, :].astype(out_b_ref.dtype)


def sceneflow_forward(x, t, params, *, tile_p=16384, pointwise_dtype=None):
    """x: (N, 3, H, W), t: (N, 1, H, W) (NCHW, like PyTorch).

    Returns (forward_flow, backward_flow), each (N, 3, H, W) float32.
    """
    N, cx, H, W = x.shape
    assert cx == 3 and t.shape == (N, 1, H, W)

    if pointwise_dtype is None:
        pointwise_dtype = _default_pointwise_dtype()

    net_width = params["w0"].shape[1]
    out_dim = params["wf"].shape[1]
    n_hidden = sum(1 for k in params if k[0] == "w" and k[1:].isdigit()) - 1
    assert n_hidden >= 1

    # ---- pixel tiling: pixels on the last (lane) axis, batch as a grid axis
    P = H * W
    n_tiles = max(1, -(-P // tile_p))                      # cdiv
    # v7x megacore: keep >= 2 total grid steps so both TensorCores get work.
    if N * n_tiles < 2 and P > 128:
        n_tiles = 2
    tile_p = _round_up(-(-P // n_tiles), 128)
    P_pad = tile_p * n_tiles

    x3 = x.reshape(N, 3, P)                                # free reshape (NCHW)
    t3 = t.reshape(N, 1, P)
    if P_pad != P:
        pad = ((0, 0), (0, 0), (0, P_pad - P))
        x3 = jnp.pad(x3, pad)
        t3 = jnp.pad(t3, pad)

    # ---- pack the 12 parameter tensors into 5 arrays (tiny, trace-time) ----
    w0T = params["w0"].T.astype(jnp.bfloat16)                          # (W, 4)
    whT = jnp.stack([params[f"w{i}"].T
                     for i in range(1, n_hidden + 1)]).astype(jnp.bfloat16)

    bwd_off = _round_up(out_dim, 8)
    head_rows = _round_up(bwd_off + out_dim, 8)                        # 16
    wheadT = jnp.zeros((head_rows, net_width), jnp.float32)
    wheadT = wheadT.at[0:out_dim].set(params["wf"].T)
    wheadT = wheadT.at[bwd_off:bwd_off + out_dim].set(params["wb"].T)
    wheadT = wheadT.astype(jnp.bfloat16)                               # (HR, W)

    b_hid = jnp.stack([params[f"b{i}"][0]
                       for i in range(n_hidden + 1)], axis=0)[..., None]
    b_hid = b_hid.astype(pointwise_dtype)                              # (L+1, W, 1)
    b_head = jnp.zeros((head_rows, 1), jnp.float32)
    b_head = b_head.at[0:out_dim, 0].set(params["bf"][0])
    b_head = b_head.at[bwd_off:bwd_off + out_dim, 0].set(params["bb"][0])

    grid = (N, P_pad // tile_p)

    def pix_spec(c):
        return pl.BlockSpec((1, c, tile_p), lambda n, p: (n, 0, p))

    def full_spec(shape):
        # Constant block index -> Pallas fetches these once, not per grid step.
        return pl.BlockSpec(shape, lambda n, p: (0,) * len(shape))

    out_shapes = (jax.ShapeDtypeStruct((N, out_dim, P_pad), jnp.float32),
                  jax.ShapeDtypeStruct((N, out_dim, P_pad), jnp.float32))

    fwd3, bwd3 = pl.pallas_call(
        _sceneflow_kernel,
        out_shape=out_shapes,
        grid_spec=pltpu.PrefetchScalarGridSpec(
            num_scalar_prefetch=0,
            grid=grid,
            in_specs=[pix_spec(3), pix_spec(1),
                      full_spec(w0T.shape), full_spec(whT.shape),
                      full_spec(wheadT.shape), full_spec(b_hid.shape),
                      full_spec(b_head.shape)],
            out_specs=[pix_spec(out_dim), pix_spec(out_dim)],
        ),
        compiler_params=pltpu.CompilerParams(
            dimension_semantics=("parallel", "parallel"),
            vmem_limit_bytes=32 * 1024 * 1024),
    )(x3, t3, w0T, whT, wheadT, b_hid, b_head)

    if P_pad != P:
        fwd3 = fwd3[:, :, :P]
        bwd3 = bwd3[:, :, :P]
    return (fwd3.reshape(N, out_dim, H, W),
            bwd3.reshape(N, out_dim, H, W))


def init_params(key, n_input=4, net_width=32, output_dim=3, n_layers=3):
    """Deterministic synthetic weights.  Weight matrices are stored (Cin, Cout)
    (== PyTorch conv weight (Cout, Cin, 1, 1) transposed); biases as (1, Cout)."""
    params = {}
    dims = [(n_input, net_width)] + [(net_width, net_width)] * n_layers
    keys = jax.random.split(key, len(dims) + 2)
    for i, (cin, cout) in enumerate(dims):
        kw, kb = jax.random.split(keys[i])
        scale = 1.0 / jnp.sqrt(cin)
        params[f"w{i}"] = jax.random.uniform(kw, (cin, cout), jnp.float32,
                                             -scale, scale)
        params[f"b{i}"] = jax.random.uniform(kb, (1, cout), jnp.float32,
                                             -scale, scale)
    for name, kk in (("f", keys[-2]), ("b", keys[-1])):
        kw, kb = jax.random.split(kk)
        scale = 1.0 / jnp.sqrt(net_width)
        params[f"w{name}"] = jax.random.uniform(kw, (net_width, output_dim),
                                                jnp.float32, -scale, scale)
        params[f"b{name}"] = jax.random.uniform(kb, (1, output_dim),
                                                jnp.float32, -scale, scale)
    return params


def _reference_forward(x, t, params):
    """Pure-JAX f32 reference of the same forward pass (sanity check)."""
    N, _, H, W = x.shape
    feat = jnp.concatenate([t, x], axis=1)
    h = jnp.transpose(feat, (0, 2, 3, 1)).reshape(-1, feat.shape[1])
    n_layers_total = sum(1 for k in params if k[0] == "w" and k[1:].isdigit())
    for i in range(n_layers_total):
        z = h @ params[f"w{i}"] + params[f"b{i}"]
        h = jnp.maximum(z, NEG_SLOPE * z)
    f = h @ params["wf"] + params["bf"]
    b = h @ params["wb"] + params["bb"]
    od = f.shape[1]
    f = jnp.transpose(f.reshape(N, H, W, od), (0, 3, 1, 2))
    b = jnp.transpose(b.reshape(N, H, W, od), (0, 3, 1, 2))
    return f, b


if __name__ == "__main__":
    key = jax.random.PRNGKey(0)
    kx, kt, kp = jax.random.split(key, 3)

    # Small NCHW inputs consistent with the module: xyz map (3 ch) + time map (1 ch).
    N, H, W = 2, 16, 16
    x = jax.random.normal(kx, (N, 3, H, W), jnp.float32)
    t = jax.random.normal(kt, (N, 1, H, W), jnp.float32)

    params = init_params(kp)

    fwd, bwd = sceneflow_forward(x, t, params)
    jax.block_until_ready((fwd, bwd))

    # Sanity check against the pure-JAX f32 reference.  Kernel matmuls use
    # bf16 operands (f32 accumulation) and, on v6e/v7x, bf16 pointwise
    # epilogues, so tolerance is loosened vs. an exact-f32 comparison.
    rf, rb = _reference_forward(x, t, params)
    assert fwd.shape == (N, 3, H, W) and bwd.shape == (N, 3, H, W)
    assert jnp.allclose(fwd, rf, atol=3e-2, rtol=3e-2), (
        float(jnp.max(jnp.abs(fwd - rf))))
    assert jnp.allclose(bwd, rb, atol=3e-2, rtol=3e-2), (
        float(jnp.max(jnp.abs(bwd - rb))))

    print("KERNEL_OK")
</pallas_src>

<mosaic_0001>
module attributes {stable_mosaic.version = 11 : i64} {
  func.func @_sceneflow_kernel(%arg0: i32, %arg1: i32, %arg2: memref<1x3x256xf32, #tpu.memory_space<vmem>>, %arg3: memref<1x1x256xf32, #tpu.memory_space<vmem>>, %arg4: memref<32x4xbf16, #tpu.memory_space<vmem>>, %arg5: memref<3x32x32xbf16, #tpu.memory_space<vmem>>, %arg6: memref<16x32xbf16, #tpu.memory_space<vmem>>, %arg7: memref<4x32x1xbf16, #tpu.memory_space<vmem>>, %arg8: memref<16x1xf32, #tpu.memory_space<vmem>>, %arg9: memref<1x3x256xf32, #tpu.memory_space<vmem>>, %arg10: memref<1x3x256xf32, #tpu.memory_space<vmem>>) attributes {dimension_semantics = [#tpu.dimension_semantics<parallel>, #tpu.dimension_semantics<parallel>], iteration_bounds = array<i64: 2, 1>, scalar_prefetch = 0 : i64, scratch_operands = 0 : i64, tpu.core_type = #tpu.core_type<tc>, window_params = [{transform_indices = @transform_0, window_bounds = array<i64: 1, 3, 256>}, {transform_indices = @transform_1, window_bounds = array<i64: 1, 1, 256>}, {pipeline_mode = #tpu.pipeline_mode<synchronous>, transform_indices = @transform_2, window_bounds = array<i64: 32, 4>}, {pipeline_mode = #tpu.pipeline_mode<synchronous>, transform_indices = @transform_3, window_bounds = array<i64: 3, 32, 32>}, {pipeline_mode = #tpu.pipeline_mode<synchronous>, transform_indices = @transform_4, window_bounds = array<i64: 16, 32>}, {pipeline_mode = #tpu.pipeline_mode<synchronous>, transform_indices = @transform_5, window_bounds = array<i64: 4, 32, 1>}, {pipeline_mode = #tpu.pipeline_mode<synchronous>, transform_indices = @transform_6, window_bounds = array<i64: 16, 1>}, {transform_indices = @transform_7, window_bounds = array<i64: 1, 3, 256>}, {transform_indices = @transform_8, window_bounds = array<i64: 1, 3, 256>}]} {
    %c0 = arith.constant 0 : index
    %c0_0 = arith.constant 0 : index
    %c0_1 = arith.constant 0 : index
    %0 = vector.load %arg2[%c0, %c0_0, %c0_1] : memref<1x3x256xf32, #tpu.memory_space<vmem>>, vector<1x3x256xf32>
    %1 = vector.shape_cast %0 : vector<1x3x256xf32> to vector<3x256xf32>
    %2 = arith.truncf %1 : vector<3x256xf32> to vector<3x256xbf16>
    %c0_2 = arith.constant 0 : index
    %c0_3 = arith.constant 0 : index
    %c0_4 = arith.constant 0 : index
    %3 = vector.load %arg3[%c0_2, %c0_3, %c0_4] : memref<1x1x256xf32, #tpu.memory_space<vmem>>, vector<1x1x256xf32>
    %4 = vector.shape_cast %3 : vector<1x1x256xf32> to vector<1x256xf32>
    %5 = arith.truncf %4 : vector<1x256xf32> to vector<1x256xbf16>
    %c0_5 = arith.constant 0 : index
    %c1 = arith.constant 1 : index
    %6 = vector.load %arg4[%c0_5, %c1] : memref<32x4xbf16, #tpu.memory_space<vmem>>, vector<32x3xbf16>
    %cst = arith.constant dense<0.000000e+00> : vector<32x256xf32>
    %7 = tpu.matmul %6, %2, %cst {dimension_numbers = #tpu.dot_dimension_numbers<[1], [0], [0], [1], [0, 0, 1, 1], [], []>} : vector<32x3xbf16>, vector<3x256xbf16>, vector<32x256xf32> -> vector<32x256xf32>
    %8 = arith.truncf %7 : vector<32x256xf32> to vector<32x256xbf16>
    %c0_6 = arith.constant 0 : index
    %c0_7 = arith.constant 0 : index
    %9 = vector.load %arg4[%c0_6, %c0_7] : memref<32x4xbf16, #tpu.memory_space<vmem>>, vector<32x1xbf16>
    %10 = vector.broadcast %9 : vector<32x1xbf16> to vector<32x256xbf16>
    %11 = vector.broadcast %5 : vector<1x256xbf16> to vector<32x256xbf16>
    %12 = arith.mulf %10, %11 : vector<32x256xbf16>
    %13 = arith.addf %8, %12 : vector<32x256xbf16>
    %c0_8 = arith.constant 0 : index
    %c0_9 = arith.constant 0 : index
    %c0_10 = arith.constant 0 : index
    %14 = vector.load %arg7[%c0_8, %c0_9, %c0_10] : memref<4x32x1xbf16, #tpu.memory_space<vmem>>, vector<1x32x1xbf16>
    %15 = vector.shape_cast %14 : vector<1x32x1xbf16> to vector<32x1xbf16>
    %16 = vector.broadcast %15 : vector<32x1xbf16> to vector<32x256xbf16>
    %17 = arith.addf %13, %16 : vector<32x256xbf16>
    %cst_11 = arith.constant 2.001950e-01 : bf16
    %18 = vector.broadcast %cst_11 : bf16 to vector<32x256xbf16>
    %19 = arith.mulf %18, %17 : vector<32x256xbf16>
    %20 = arith.maximumf %17, %19 : vector<32x256xbf16>
    %c0_12 = arith.constant 0 : index
    %c0_13 = arith.constant 0 : index
    %c0_14 = arith.constant 0 : index
    %21 = vector.load %arg5[%c0_12, %c0_13, %c0_14] : memref<3x32x32xbf16, #tpu.memory_space<vmem>>, vector<1x32x32xbf16>
    %22 = vector.shape_cast %21 : vector<1x32x32xbf16> to vector<32x32xbf16>
    %cst_15 = arith.constant dense<0.000000e+00> : vector<32x256xf32>
    %23 = tpu.matmul %22, %20, %cst_15 {dimension_numbers = #tpu.dot_dimension_numbers<[1], [0], [0], [1], [0, 0, 1, 1], [], []>} : vector<32x32xbf16>, vector<32x256xbf16>, vector<32x256xf32> -> vector<32x256xf32>
    %24 = arith.truncf %23 : vector<32x256xf32> to vector<32x256xbf16>
    %c1_16 = arith.constant 1 : index
    %c0_17 = arith.constant 0 : index
    %c0_18 = arith.constant 0 : index
    %25 = vector.load %arg7[%c1_16, %c0_17, %c0_18] : memref<4x32x1xbf16, #tpu.memory_space<vmem>>, vector<1x32x1xbf16>
    %26 = vector.shape_cast %25 : vector<1x32x1xbf16> to vector<32x1xbf16>
    %27 = vector.broadcast %26 : vector<32x1xbf16> to vector<32x256xbf16>
    %28 = arith.addf %24, %27 : vector<32x256xbf16>
    %cst_19 = arith.constant 2.001950e-01 : bf16
    %29 = vector.broadcast %cst_19 : bf16 to vector<32x256xbf16>
    %30 = arith.mulf %29, %28 : vector<32x256xbf16>
    %31 = arith.maximumf %28, %30 : vector<32x256xbf16>
    %c1_20 = arith.constant 1 : index
    %c0_21 = arith.constant 0 : index
    %c0_22 = arith.constant 0 : index
    %32 = vector.load %arg5[%c1_20, %c0_21, %c0_22] : memref<3x32x32xbf16, #tpu.memory_space<vmem>>, vector<1x32x32xbf16>
    %33 = vector.shape_cast %32 : vector<1x32x32xbf16> to vector<32x32xbf16>
    %cst_23 = arith.constant dense<0.000000e+00> : vector<32x256xf32>
    %34 = tpu.matmul %33, %31, %cst_23 {dimension_numbers = #tpu.dot_dimension_numbers<[1], [0], [0], [1], [0, 0, 1, 1], [], []>} : vector<32x32xbf16>, vector<32x256xbf16>, vector<32x256xf32> -> vector<32x256xf32>
    %35 = arith.truncf %34 : vector<32x256xf32> to vector<32x256xbf16>
    %c2 = arith.constant 2 : index
    %c0_24 = arith.constant 0 : index
    %c0_25 = arith.constant 0 : index
    %36 = vector.load %arg7[%c2, %c0_24, %c0_25] : memref<4x32x1xbf16, #tpu.memory_space<vmem>>, vector<1x32x1xbf16>
    %37 = vector.shape_cast %36 : vector<1x32x1xbf16> to vector<32x1xbf16>
    %38 = vector.broadcast %37 : vector<32x1xbf16> to vector<32x256xbf16>
    %39 = arith.addf %35, %38 : vector<32x256xbf16>
    %cst_26 = arith.constant 2.001950e-01 : bf16
    %40 = vector.broadcast %cst_26 : bf16 to vector<32x256xbf16>
    %41 = arith.mulf %40, %39 : vector<32x256xbf16>
    %42 = arith.maximumf %39, %41 : vector<32x256xbf16>
    %c2_27 = arith.constant 2 : index
    %c0_28 = arith.constant 0 : index
    %c0_29 = arith.constant 0 : index
    %43 = vector.load %arg5[%c2_27, %c0_28, %c0_29] : memref<3x32x32xbf16, #tpu.memory_space<vmem>>, vector<1x32x32xbf16>
    %44 = vector.shape_cast %43 : vector<1x32x32xbf16> to vector<32x32xbf16>
    %cst_30 = arith.constant dense<0.000000e+00> : vector<32x256xf32>
    %45 = tpu.matmul %44, %42, %cst_30 {dimension_numbers = #tpu.dot_dimension_numbers<[1], [0], [0], [1], [0, 0, 1, 1], [], []>} : vector<32x32xbf16>, vector<32x256xbf16>, vector<32x256xf32> -> vector<32x256xf32>
    %46 = arith.truncf %45 : vector<32x256xf32> to vector<32x256xbf16>
    %c3 = arith.constant 3 : index
    %c0_31 = arith.constant 0 : index
    %c0_32 = arith.constant 0 : index
    %47 = vector.load %arg7[%c3, %c0_31, %c0_32] : memref<4x32x1xbf16, #tpu.memory_space<vmem>>, vector<1x32x1xbf16>
    %48 = vector.shape_cast %47 : vector<1x32x1xbf16> to vector<32x1xbf16>
    %49 = vector.broadcast %48 : vector<32x1xbf16> to vector<32x256xbf16>
    %50 = arith.addf %46, %49 : vector<32x256xbf16>
    %cst_33 = arith.constant 2.001950e-01 : bf16
    %51 = vector.broadcast %cst_33 : bf16 to vector<32x256xbf16>
    %52 = arith.mulf %51, %50 : vector<32x256xbf16>
    %53 = arith.maximumf %50, %52 : vector<32x256xbf16>
    %c0_34 = arith.constant 0 : index
    %c0_35 = arith.constant 0 : index
    %54 = vector.load %arg6[%c0_34, %c0_35] : memref<16x32xbf16, #tpu.memory_space<vmem>>, vector<16x32xbf16>
    %cst_36 = arith.constant dense<0.000000e+00> : vector<16x256xf32>
    %55 = tpu.matmul %54, %53, %cst_36 {dimension_numbers = #tpu.dot_dimension_numbers<[1], [0], [0], [1], [0, 0, 1, 1], [], []>} : vector<16x32xbf16>, vector<32x256xbf16>, vector<16x256xf32> -> vector<16x256xf32>
    %c0_37 = arith.constant 0 : index
    %c0_38 = arith.constant 0 : index
    %56 = vector.load %arg8[%c0_37, %c0_38] : memref<16x1xf32, #tpu.memory_space<vmem>>, vector<16x1xf32>
    %57 = vector.broadcast %56 : vector<16x1xf32> to vector<16x256xf32>
    %58 = arith.addf %55, %57 : vector<16x256xf32>
    %59 = vector.extract_strided_slice %58 {offsets = [0, 0], sizes = [3, 256], strides = [1, 1]} : vector<16x256xf32> to vector<3x256xf32>
    %c0_39 = arith.constant 0 : index
    %c0_40 = arith.constant 0 : index
    %c0_41 = arith.constant 0 : index
    %60 = vector.load %arg9[%c0_39, %c0_40, %c0_41] : memref<1x3x256xf32, #tpu.memory_space<vmem>>, vector<1x3x256xf32>
    %61 = vector.shape_cast %60 : vector<1x3x256xf32> to vector<3x256xf32>
    %62 = vector.shape_cast %59 : vector<3x256xf32> to vector<1x3x256xf32>
    tpu.vector_store %arg9[%c0_39, %c0_40, %c0_41], %62 {strides = array<i32>} : memref<1x3x256xf32, #tpu.memory_space<vmem>>, vector<1x3x256xf32>,
    %63 = vector.extract_strided_slice %58 {offsets = [8, 0], sizes = [3, 256], strides = [1, 1]} : vector<16x256xf32> to vector<3x256xf32>
    %c0_42 = arith.constant 0 : index
    %c0_43 = arith.constant 0 : index
    %c0_44 = arith.constant 0 : index
    %64 = vector.load %arg10[%c0_42, %c0_43, %c0_44] : memref<1x3x256xf32, #tpu.memory_space<vmem>>, vector<1x3x256xf32>
    %65 = vector.shape_cast %64 : vector<1x3x256xf32> to vector<3x256xf32>
    %66 = vector.shape_cast %63 : vector<3x256xf32> to vector<1x3x256xf32>
    tpu.vector_store %arg10[%c0_42, %c0_43, %c0_44], %66 {strides = array<i32>} : memref<1x3x256xf32, #tpu.memory_space<vmem>>, vector<1x3x256xf32>,
    return
  }
  func.func @transform_0(%arg0: i32, %arg1: i32) -> (i32, i32, i32) {
    %c0_i32 = arith.constant 0 : i32
    %c0_i32_0 = arith.constant 0 : i32
    return %arg0, %c0_i32, %arg1 : i32, i32, i32
  }
  func.func @transform_1(%arg0: i32, %arg1: i32) -> (i32, i32, i32) {
    %c0_i32 = arith.constant 0 : i32
    %c0_i32_0 = arith.constant 0 : i32
    return %arg0, %c0_i32, %arg1 : i32, i32, i32
  }
  func.func @transform_2(%arg0: i32, %arg1: i32) -> (i32, i32) {
    %c0_i32 = arith.constant 0 : i32
    %c0_i32_0 = arith.constant 0 : i32
    %c0_i32_1 = arith.constant 0 : i32
    return %c0_i32, %c0_i32_0 : i32, i32
  }
  func.func @transform_3(%arg0: i32, %arg1: i32) -> (i32, i32, i32) {
    %c0_i32 = arith.constant 0 : i32
    %c0_i32_0 = arith.constant 0 : i32
    %c0_i32_1 = arith.constant 0 : i32
    %c0_i32_2 = arith.constant 0 : i32
    return %c0_i32, %c0_i32_0, %c0_i32_1 : i32, i32, i32
  }
  func.func @transform_4(%arg0: i32, %arg1: i32) -> (i32, i32) {
    %c0_i32 = arith.constant 0 : i32
    %c0_i32_0 = arith.constant 0 : i32
    %c0_i32_1 = arith.constant 0 : i32
    return %c0_i32, %c0_i32_0 : i32, i32
  }
  func.func @transform_5(%arg0: i32, %arg1: i32) -> (i32, i32, i32) {
    %c0_i32 = arith.constant 0 : i32
    %c0_i32_0 = arith.constant 0 : i32
    %c0_i32_1 = arith.constant 0 : i32
    %c0_i32_2 = arith.constant 0 : i32
    return %c0_i32, %c0_i32_0, %c0_i32_1 : i32, i32, i32
  }
  func.func @transform_6(%arg0: i32, %arg1: i32) -> (i32, i32) {
    %c0_i32 = arith.constant 0 : i32
    %c0_i32_0 = arith.constant 0 : i32
    %c0_i32_1 = arith.constant 0 : i32
    return %c0_i32, %c0_i32_0 : i32, i32
  }
  func.func @transform_7(%arg0: i32, %arg1: i32) -> (i32, i32, i32) {
    %c0_i32 = arith.constant 0 : i32
    %c0_i32_0 = arith.constant 0 : i32
    return %arg0, %c0_i32, %arg1 : i32, i32, i32
  }
  func.func @transform_8(%arg0: i32, %arg1: i32) -> (i32, i32, i32) {
    %c0_i32 = arith.constant 0 : i32
    %c0_i32_0 = arith.constant 0 : i32
    return %arg0, %c0_i32, %arg1 : i32, i32, i32
  }
}

</mosaic_0001>

<llo_original>
// kernel: tpu_custom_call.1
$region0: #{tpu_custom_call.1}
  #allocation0 [shape = 'u32[]', space=smem, size = 0x4, offset = 0x4, fixed_abs, tag = 'smem constant byte address 0x4 - core index']
  #allocation1 [shape = 'u32[72,128]{1,0:T(1,128)}', space=vmem, size = 0x9000, scoped, tag = 'internal scratch']
  %s0 = inlined_call_operand.vmem [shape: f32[2,3,256], index: 0, kind: input, shape index: {}]
  %s1 = inlined_call_operand.vmem [shape: f32[2,1,256], index: 1, kind: input, shape index: {}]
  %s2 = inlined_call_operand.vmem [shape: bf16[32,4], index: 2, kind: input, shape index: {}]
  %s3 = inlined_call_operand.vmem [shape: bf16[3,32,32], index: 3, kind: input, shape index: {}]
  %s4 = inlined_call_operand.vmem [shape: bf16[16,32], index: 4, kind: input, shape index: {}]
  %s5 = inlined_call_operand.vmem [shape: bf16[4,32,1], index: 5, kind: input, shape index: {}]
  %s6 = inlined_call_operand.vmem [shape: f32[16,1], index: 6, kind: input, shape index: {}]
  %s7 = inlined_call_operand.vmem [shape: f32[2,3,256], index: 7, kind: output, shape index: {0}]
  %s8 = inlined_call_operand.vmem [shape: f32[2,3,256], index: 8, kind: output, shape index: {1}]
  %9 = xla_tuple %s7, %s8
  %s10 = sld [smem:[#allocation0]]
  $region69: #{tpu_custom_call.1} parent=0
    _
  %s12 = ssub.s32 1, %s10
  %s13 = scalar_select 0, %s12, %s10
  loop: start=0, step=1, limit=4
  $region2: #{tpu_custom_call.1} parent=0 // loop_pre_header
    _
  $region3: #{tpu_custom_call.1} parent=0 // loop_header
    %s15 = sphi 0, %s19
    %p16 = scmp.ge.s32.totalorder %s15, 4
    %s22 = sphi 0, %s34
    %s23 = sphi 0, %s30
    %s24 = sphi 0, %s22
    %s25 = sphi 0, %s23
    %s26 = sphi 0, %s24
    %s27 = sphi 0, %s25
    %s39 = sphi 0, %s41
    %s42 = sphi 0, %s39
    %s43 = sphi 0, %s42
    %s59 = sphi 0, %s43
    %s67 = sphi 0, %s69
    %s70 = sphi 0, %s67
    %s71 = sphi 0, %s70
    %s87 = sphi 0, %s71
    %s91 = sphi 0, %s91
    %s93 = sphi 0, %s91
    %s94 = sphi 0, %s93
    %s108 = sphi 0, %s94
    %s112 = sphi 0, %s112
    %s114 = sphi 0, %s112
    %s115 = sphi 0, %s114
    %s129 = sphi 0, %s115
    %s133 = sphi 0, %s133
    %s135 = sphi 0, %s133
    %s136 = sphi 0, %s135
    %s150 = sphi 0, %s136
    %s154 = sphi 0, %s154
    %s156 = sphi 0, %s154
    %s157 = sphi 0, %s156
    %s171 = sphi 0, %s157
    %s175 = sphi 0, %s175
    %s177 = sphi 0, %s175
    %s178 = sphi 0, %s177
    %s192 = sphi 0, %s178
    %s200 = sphi 0, %s202
    %s203 = sphi 0, %s200
    %s204 = sphi 0, %s203
    %s220 = sphi 0, %s204
    %s228 = sphi 0, %s230
    %s231 = sphi 0, %s228
    %s232 = sphi 0, %s231
    %s248 = sphi 0, %s232
  $region4: #{tpu_custom_call.1} parent=0 // loop_header_branch
    %18 = sbr.rel (%p16) target = $region8
  $region5: #{tpu_custom_call.1} parent=0 // loop_body
    %s20 = ssub.s32 %s15, 1
    %s21 = ssub.s32 %s15, 2
    %s28 = sadd.s32 1, %s23
    %p29 = scmp.ge.s32.totalorder %s28, 1
    %s30 = scalar_select %p29, 0, %s28
    %s31 = sadd.s32 1, %s22
    %s32 = scalar_select %p29, %s31, %s22
    %p33 = scmp.ge.s32.totalorder %s32, 2
    %s34 = scalar_select %p33, 0, %s32
    %s35 = ssub.s32 %s22, %s34
    %s36 = ssub.s32 %s23, %s30
    %s37 = sor.u32 %s35, %s36
    %p38 = scmp.eq.s32.totalorder %s37, 0
    %s40 = sadd.s32 %s39, 1
    %s41 = scalar_select %p38, %s39, %s40
    %p44 = pneg %p38
    %p45 = scmp.eq.s32.totalorder %s15, 1
    %p46 = por %p44, %p45
    %p47 = scmp.ne.s32.totalorder %s39, %s42
    %p48 = scmp.eq.s32.totalorder %s15, 0
    %p49 = por %p47, %p48
    %p50 = scmp.ne.s32.totalorder %s39, %s42
    %p51 = scmp.eq.s32.totalorder %s20, 1
    %p52 = por %p50, %p51
    %p53 = scmp.ne.s32.totalorder %s42, %s43
    %p54 = scmp.eq.s32.totalorder %s20, 0
    %p55 = por %p53, %p54
    %p56 = scmp.ne.s32.totalorder %s42, %s43
    %p57 = scmp.eq.s32.totalorder %s21, 1
    %p58 = por %p56, %p57
    %p60 = scmp.ne.s32.totalorder %s43, %s59
    %p61 = scmp.eq.s32.totalorder %s21, 0
    %p62 = por %p60, %p61
    %s63 = ssub.s32 %s22, %s34
    %s64 = ssub.s32 %s23, %s30
    %s65 = sor.u32 %s63, %s64
    %p66 = scmp.eq.s32.totalorder %s65, 0
    %s68 = sadd.s32 %s67, 1
    %s69 = scalar_select %p66, %s67, %s68
    %p72 = pneg %p66
    %p73 = scmp.eq.s32.totalorder %s15, 1
    %p74 = por %p72, %p73
    %p75 = scmp.ne.s32.totalorder %s67, %s70
    %p76 = scmp.eq.s32.totalorder %s15, 0
    %p77 = por %p75, %p76
    %p78 = scmp.ne.s32.totalorder %s67, %s70
    %p79 = scmp.eq.s32.totalorder %s20, 1
    %p80 = por %p78, %p79
    %p81 = scmp.ne.s32.totalorder %s70, %s71
    %p82 = scmp.eq.s32.totalorder %s20, 0
    %p83 = por %p81, %p82
    %p84 = scmp.ne.s32.totalorder %s70, %s71
    %p85 = scmp.eq.s32.totalorder %s21, 1
    %p86 = por %p84, %p85
    %p88 = scmp.ne.s32.totalorder %s71, %s87
    %p89 = scmp.eq.s32.totalorder %s21, 0
    %p90 = por %p88, %p89
    %s92 = sadd.s32 %s91, 1
    %p95 = scmp.eq.s32.totalorder %s15, 1
    %p96 = scmp.ne.s32.totalorder %s91, %s93
    %p97 = scmp.eq.s32.totalorder %s15, 0
    %p98 = por %p96, %p97
    %p99 = scmp.ne.s32.totalorder %s91, %s93
    %p100 = scmp.eq.s32.totalorder %s20, 1
    %p101 = por %p99, %p100
    %p102 = scmp.ne.s32.totalorder %s93, %s94
    %p103 = scmp.eq.s32.totalorder %s20, 0
    %p104 = por %p102, %p103
    %p105 = scmp.ne.s32.totalorder %s93, %s94
    %p106 = scmp.eq.s32.totalorder %s21, 1
    %p107 = por %p105, %p106
    %p109 = scmp.ne.s32.totalorder %s94, %s108
    %p110 = scmp.eq.s32.totalorder %s21, 0
    %p111 = por %p109, %p110
    %s113 = sadd.s32 %s112, 1
    %p116 = scmp.eq.s32.totalorder %s15, 1
    %p117 = scmp.ne.s32.totalorder %s112, %s114
    %p118 = scmp.eq.s32.totalorder %s15, 0
    %p119 = por %p117, %p118
    %p120 = scmp.ne.s32.totalorder %s112, %s114
    %p121 = scmp.eq.s32.totalorder %s20, 1
    %p122 = por %p120, %p121
    %p123 = scmp.ne.s32.totalorder %s114, %s115
    %p124 = scmp.eq.s32.totalorder %s20, 0
    %p125 = por %p123, %p124
    %p126 = scmp.ne.s32.totalorder %s114, %s115
    %p127 = scmp.eq.s32.totalorder %s21, 1
    %p128 = por %p126, %p127
    %p130 = scmp.ne.s32.totalorder %s115, %s129
    %p131 = scmp.eq.s32.totalorder %s21, 0
    %p132 = por %p130, %p131
    %s134 = sadd.s32 %s133, 1
    %p137 = scmp.eq.s32.totalorder %s15, 1
    %p138 = scmp.ne.s32.totalorder %s133, %s135
    %p139 = scmp.eq.s32.totalorder %s15, 0
    %p140 = por %p138, %p139
    %p141 = scmp.ne.s32.totalorder %s133, %s135
    %p142 = scmp.eq.s32.totalorder %s20, 1
    %p143 = por %p141, %p142
    %p144 = scmp.ne.s32.totalorder %s135, %s136
    %p145 = scmp.eq.s32.totalorder %s20, 0
    %p146 = por %p144, %p145
    %p147 = scmp.ne.s32.totalorder %s135, %s136
    %p148 = scmp.eq.s32.totalorder %s21, 1
    %p149 = por %p147, %p148
    %p151 = scmp.ne.s32.totalorder %s136, %s150
    %p152 = scmp.eq.s32.totalorder %s21, 0
    %p153 = por %p151, %p152
    %s155 = sadd.s32 %s154, 1
    %p158 = scmp.eq.s32.totalorder %s15, 1
    %p159 = scmp.ne.s32.totalorder %s154, %s156
    %p160 = scmp.eq.s32.totalorder %s15, 0
    %p161 = por %p159, %p160
    %p162 = scmp.ne.s32.totalorder %s154, %s156
    %p163 = scmp.eq.s32.totalorder %s20, 1
    %p164 = por %p162, %p163
    %p165 = scmp.ne.s32.totalorder %s156, %s157
    %p166 = scmp.eq.s32.totalorder %s20, 0
    %p167 = por %p165, %p166
    %p168 = scmp.ne.s32.totalorder %s156, %s157
    %p169 = scmp.eq.s32.totalorder %s21, 1
    %p170 = por %p168, %p169
    %p172 = scmp.ne.s32.totalorder %s157, %s171
    %p173 = scmp.eq.s32.totalorder %s21, 0
    %p174 = por %p172, %p173
    %s176 = sadd.s32 %s175, 1
    %p179 = scmp.eq.s32.totalorder %s15, 1
    %p180 = scmp.ne.s32.totalorder %s175, %s177
    %p181 = scmp.eq.s32.totalorder %s15, 0
    %p182 = por %p180, %p181
    %p183 = scmp.ne.s32.totalorder %s175, %s177
    %p184 = scmp.eq.s32.totalorder %s20, 1
    %p185 = por %p183, %p184
    %p186 = scmp.ne.s32.totalorder %s177, %s178
    %p187 = scmp.eq.s32.totalorder %s20, 0
    %p188 = por %p186, %p187
    %p189 = scmp.ne.s32.totalorder %s177, %s178
    %p190 = scmp.eq.s32.totalorder %s21, 1
    %p191 = por %p189, %p190
    %p193 = scmp.ne.s32.totalorder %s178, %s192
    %p194 = scmp.eq.s32.totalorder %s21, 0
    %p195 = por %p193, %p194
    %s196 = ssub.s32 %s22, %s34
    %s197 = ssub.s32 %s23, %s30
    %s198 = sor.u32 %s196, %s197
    %p199 = scmp.eq.s32.totalorder %s198, 0
    %s201 = sadd.s32 %s200, 1
    %s202 = scalar_select %p199, %s200, %s201
    %p205 = pneg %p199
    %p206 = scmp.eq.s32.totalorder %s15, 1
    %p207 = por %p205, %p206
    %p208 = scmp.ne.s32.totalorder %s200, %s203
    %p209 = scmp.eq.s32.totalorder %s15, 0
    %p210 = por %p208, %p209
    %p211 = scmp.ne.s32.totalorder %s200, %s203
    %p212 = scmp.eq.s32.totalorder %s20, 1
    %p213 = por %p211, %p212
    %p214 = scmp.ne.s32.totalorder %s203, %s204
    %p215 = scmp.eq.s32.totalorder %s20, 0
    %p216 = por %p214, %p215
    %p217 = scmp.ne.s32.totalorder %s203, %s204
    %p218 = scmp.eq.s32.totalorder %s21, 1
    %p219 = por %p217, %p218
    %p221 = scmp.ne.s32.totalorder %s204, %s220
    %p222 = scmp.eq.s32.totalorder %s21, 0
    %p223 = por %p221, %p222
    %s224 = ssub.s32 %s22, %s34
    %s225 = ssub.s32 %s23, %s30
    %s226 = sor.u32 %s224, %s225
    %p227 = scmp.eq.s32.totalorder %s226, 0
    %s229 = sadd.s32 %s228, 1
    %s230 = scalar_select %p227, %s228, %s229
    %p233 = pneg %p227
    %p234 = scmp.eq.s32.totalorder %s15, 1
    %p235 = por %p233, %p234
    %p236 = scmp.ne.s32.totalorder %s228, %s231
    %p237 = scmp.eq.s32.totalorder %s15, 0
    %p238 = por %p236, %p237
    %p239 = scmp.ne.s32.totalorder %s228, %s231
    %p240 = scmp.eq.s32.totalorder %s20, 1
    %p241 = por %p239, %p240
    %p242 = scmp.ne.s32.totalorder %s231, %s232
    %p243 = scmp.eq.s32.totalorder %s20, 0
    %p244 = por %p242, %p243
    %p245 = scmp.ne.s32.totalorder %s231, %s232
    %p246 = scmp.eq.s32.totalorder %s21, 1
    %p247 = por %p245, %p246
    %p249 = scmp.ne.s32.totalorder %s232, %s248
    %p250 = scmp.eq.s32.totalorder %s21, 0
    %p251 = por %p249, %p250
    %p252 = scmp.le.s32.totalorder 1, %s15
    %p253 = scmp.lt.s32.totalorder %s15, 3
    %p254 = pnand %p252, %p253
    %p255 = pneg %p254
    // Predicated region
    $region9: #{tpu_custom_call.1} parent=5 // pred_check
      _
    $region10: #{tpu_custom_call.1} parent=5 // pred_check_branch
      %257 = sbr.rel (%p254) target = $region12
    $region11: #{tpu_custom_call.1} parent=5 // pred_region
      %s258 = ssub.s32 %s15, 1
      // Predicated region
      $region13: #{tpu_custom_call.1} parent=11 // pred_check
        %p259 = pneg %p104
      $region14: #{tpu_custom_call.1} parent=11 // pred_check_branch
        %261 = sbr.rel (%p259) target = $region16
      $region15: #{tpu_custom_call.1} parent=11 // pred_region
        _
      $region16: #{tpu_custom_call.1} parent=11 // pred_fallthru
        _
      // Predicated region
      $region17: #{tpu_custom_call.1} parent=11 // pred_check
        %p262 = pneg %p125
      $region18: #{tpu_custom_call.1} parent=11 // pred_check_branch
        %264 = sbr.rel (%p262) target = $region20
      $region19: #{tpu_custom_call.1} parent=11 // pred_region
        _
      $region20: #{tpu_custom_call.1} parent=11 // pred_fallthru
        _
      // Predicated region
      $region21: #{tpu_custom_call.1} parent=11 // pred_check
        %p265 = pneg %p146
      $region22: #{tpu_custom_call.1} parent=11 // pred_check_branch
        %267 = sbr.rel (%p265) target = $region24
      $region23: #{tpu_custom_call.1} parent=11 // pred_region
        _
      $region24: #{tpu_custom_call.1} parent=11 // pred_fallthru
        _
      // Predicated region
      $region25: #{tpu_custom_call.1} parent=11 // pred_check
        %p268 = pneg %p167
      $region26: #{tpu_custom_call.1} parent=11 // pred_check_branch
        %270 = sbr.rel (%p268) target = $region28
      $region27: #{tpu_custom_call.1} parent=11 // pred_region
        _
      $region28: #{tpu_custom_call.1} parent=11 // pred_fallthru
        _
      // Predicated region
      $region29: #{tpu_custom_call.1} parent=11 // pred_check
        %p271 = pneg %p188
      $region30: #{tpu_custom_call.1} parent=11 // pred_check_branch
        %273 = sbr.rel (%p271) target = $region32
      $region31: #{tpu_custom_call.1} parent=11 // pred_region
        _
      $region32: #{tpu_custom_call.1} parent=11 // pred_fallthru
        _
    $region12: #{tpu_custom_call.1} parent=5 // pred_fallthru
      _
    %p274 = scmp.lt.s32.totalorder %s15, 2
    // Predicated region
    $region33: #{tpu_custom_call.1} parent=5 // pred_check
      %p275 = pneg %p274
    $region34: #{tpu_custom_call.1} parent=5 // pred_check_branch
      %277 = sbr.rel (%p275) target = $region36
    $region35: #{tpu_custom_call.1} parent=5 // pred_region
      // Predicated region
      $region37: #{tpu_custom_call.1} parent=35 // pred_check
        %p278 = pneg %p49
      $region38: #{tpu_custom_call.1} parent=35 // pred_check_branch
        %280 = sbr.rel (%p278) target = $region40
      $region39: #{tpu_custom_call.1} parent=35 // pred_region
        %s281 = smul.u32 2, %s23
        %p282 = scmp.lt.s32.totalorder %s22, 1
        %s283 = scalar_select %p282, %s22, 1
        %p284 = scmp.lt.s32.totalorder %s281, 1
        %s285 = scalar_select %p284, %s281, 1
        %s286 = smul.addr %s283, 2
        %s287 = sadd.s32 %s285, %s286
        %s288 = smul.addr %s287, 4
        %s289 = scalar_lea.vmem %s0, %s288
        %s290 = smul.u32 2, %s23
      $region40: #{tpu_custom_call.1} parent=35 // pred_fallthru
        _
      // Predicated region
      $region41: #{tpu_custom_call.1} parent=35 // pred_check
        %p291 = pneg %p77
      $region42: #{tpu_custom_call.1} parent=35 // pred_check_branch
        %293 = sbr.rel (%p291) target = $region44
      $region43: #{tpu_custom_call.1} parent=35 // pred_region
        %s294 = smul.u32 2, %s23
        %p295 = scmp.lt.s32.totalorder %s22, 1
        %s296 = scalar_select %p295, %s22, 1
        %p297 = scmp.lt.s32.totalorder %s294, 1
        %s298 = scalar_select %p297, %s294, 1
        %s299 = smul.addr %s296, 2
        %s300 = sadd.s32 %s298, %s299
        %s301 = scalar_lea.vmem %s1, %s300
        %s302 = smul.u32 2, %s23
      $region44: #{tpu_custom_call.1} parent=35 // pred_fallthru
        _
    $region36: #{tpu_custom_call.1} parent=5 // pred_fallthru
      _
    %p303 = scmp.le.s32.totalorder 1, %s15
    %p304 = scmp.lt.s32.totalorder %s15, 3
    %p305 = pnand %p303, %p304
    %p306 = pneg %p305
    // Predicated region
    $region45: #{tpu_custom_call.1} parent=5 // pred_check
      _
    $region46: #{tpu_custom_call.1} parent=5 // pred_check_branch
      %308 = sbr.rel (%p305) target = $region48
    $region47: #{tpu_custom_call.1} parent=5 // pred_region
      %s309 = ssub.s32 %s15, 1
      %s310 = smul.u32 2, %s25
      %p311 = scmp.lt.s32.totalorder %s24, 1
      %s312 = scalar_select %p311, %s24, 1
      %p313 = scmp.lt.s32.totalorder %s310, 1
      %s314 = scalar_select %p313, %s310, 1
      %s315 = smul.addr %s312, 2
      %s316 = sadd.s32 %s314, %s315
      %s317 = smul.addr %s316, 4
      %s318 = scalar_lea.vmem %s0, %s317
      %p319 = pneg %p55
      %p320 = pneg %p52
      %s321 = smul.u32 2, %s25
      %p322 = scmp.lt.s32.totalorder %s24, 1
      %s323 = scalar_select %p322, %s24, 1
      %p324 = scmp.lt.s32.totalorder %s321, 1
      %s325 = scalar_select %p324, %s321, 1
      %s326 = smul.addr %s323, 2
      %s327 = sadd.s32 %s325, %s326
      %s328 = scalar_lea.vmem %s1, %s327
      %p329 = pneg %p83
      %p330 = pneg %p80
      %p331 = pneg %p104
      %p332 = pneg %p101
      %p333 = pneg %p125
      %p334 = pneg %p122
      %p335 = pneg %p146
      %p336 = pneg %p143
      %p337 = pneg %p167
      %p338 = pneg %p164
      %p339 = pneg %p188
      %p340 = pneg %p185
      %p341 = pneg %p216
      %p342 = pneg %p213
      %s343 = smul.u32 2, %s25
      %p344 = scmp.lt.s32.totalorder %s24, 1
      %s345 = scalar_select %p344, %s24, 1
      %p346 = scmp.lt.s32.totalorder %s343, 1
      %s347 = scalar_select %p346, %s343, 1
      %s348 = smul.addr %s345, 2
      %s349 = sadd.s32 %s347, %s348
      %s350 = smul.addr %s349, 4
      %s351 = scalar_lea.vmem %s7, %s350
      %p352 = pneg %p244
      %p353 = pneg %p241
      %s354 = smul.u32 2, %s25
      %p355 = scmp.lt.s32.totalorder %s24, 1
      %s356 = scalar_select %p355, %s24, 1
      %p357 = scmp.lt.s32.totalorder %s354, 1
      %s358 = scalar_select %p357, %s354, 1
      %s359 = smul.addr %s356, 2
      %s360 = sadd.s32 %s358, %s359
      %s361 = smul.addr %s360, 4
      %s362 = scalar_lea.vmem %s8, %s361
      %s363 = smul.u32 2, %s25
      %p364 = scmp.lt.s32.totalorder %s24, 1
      %s365 = scalar_select %p364, %s24, 1
      %p366 = scmp.lt.s32.totalorder %s363, 1
      %s367 = scalar_select %p366, %s363, 1
      %s368 = smul.addr %s365, 2
      %s369 = sadd.s32 %s367, %s368
      %s370 = smul.addr %s369, 4
      %s371 = scalar_lea.vmem %s0, %s370
      %s372 = smul.u32 2, %s25
      %s373 = smul.u32 2, %s25
      %p374 = scmp.lt.s32.totalorder %s24, 1
      %s375 = scalar_select %p374, %s24, 1
      %p376 = scmp.lt.s32.totalorder %s373, 1
      %s377 = scalar_select %p376, %s373, 1
      %s378 = smul.addr %s375, 2
      %s379 = sadd.s32 %s377, %s378
      %s380 = scalar_lea.vmem %s1, %s379
      %s381 = smul.u32 2, %s25
      %s382 = smul.u32 2, %s25
      %p383 = scmp.lt.s32.totalorder %s24, 1
      %s384 = scalar_select %p383, %s24, 1
      %p385 = scmp.lt.s32.totalorder %s382, 1
      %s386 = scalar_select %p385, %s382, 1
      %s387 = smul.addr %s384, 2
      %s388 = sadd.s32 %s386, %s387
      %s389 = smul.addr %s388, 4
      %s390 = scalar_lea.vmem %s7, %s389
      %s391 = smul.u32 2, %s25
      %s392 = smul.u32 2, %s25
      %p393 = scmp.lt.s32.totalorder %s24, 1
      %s394 = scalar_select %p393, %s24, 1
      %p395 = scmp.lt.s32.totalorder %s392, 1
      %s396 = scalar_select %p395, %s392, 1
      %s397 = smul.addr %s394, 2
      %s398 = sadd.s32 %s396, %s397
      %s399 = smul.addr %s398, 4
      %s400 = scalar_lea.vmem %s8, %s399
      %s401 = smul.u32 2, %s25
      %v403 = vld [vmem:[%s371] sm:$0x77]
      %405 = vst [vmem:[#allocation1] ss:$2 sm:$0xff] %v403
      %v406 = vld.sshfl [vmem:[#allocation1] sm:$0xff pattern:$0x75316420]
      %v407 = vld.sshfl [vmem:[#allocation1 + $0x8] sm:$0xff pattern:$0x75316420]
      %v410 = vpack.c.bf16 %v406, %v406
      %v411 = vpack.c.bf16 %v407, %v407
      %v412 = vld [vmem:[%s380] sm:$0x3]
      %v414 = vperm.slane %v412, 0
      %v415 = vperm.slane %v412, 1
      %v418 = vpack.c.bf16 %v415, %v414
      %v419 = vld [vmem:[%s2] sm:$0xf]
      %v420 = vld [vmem:[%s2 + $0x4] sm:$0xf]
      %v421 = vld [vmem:[%s2 + $0x8] sm:$0xf]
      %v422 = vld [vmem:[%s2 + $0xc] sm:$0xf]
      %v427 = vunpack.c.l.b16 %v419
      %v428 = vunpack.c.l.b16 %v420
      %v429 = vunpack.c.l.b16 %v421
      %v430 = vunpack.c.l.b16 %v422
      %v431 = vpack.c.b16 %v428, %v427
      %v432 = vpack.c.b16 %v430, %v429
      %433 = vrot.lane.b32.xlu0 %v431, 127
      %v434 = vpop.permute.xlu0 %433
      %435 = vrot.lane.b32.xlu0 %v432, 127
      %v436 = vpop.permute.xlu0 %435
      %vm437 = vcmask 23552
      %v439 = vsel %vm437, %v434, 0
      %v442 = vsel %vm437, %v436, 0
      %vm444 = vcmask 1040384
      %vm445 = vcmask 1041408
      %v446 = vsel %vm444, 4294967295, 65535
      %v447 = vsel %vm445, %v446, 0
      %v449 = vand.u32 %v410, %v447
      %v452 = vand.u32 %v411, %v447
      %454 = vmatpush.bf16.msra.mxu0 0
      %455 = vmatpush.bf16.msra.mxu0 0
      %456 = vmatpush.bf16.msra.mxu0 0
      %457 = vmatpush.bf16.msra.mxu0 0
      %458 = vmatpush.bf16.msra.mxu0 0
      %459 = vmatpush.bf16.msra.mxu0 0
      %460 = vmatpush.bf16.msra.mxu0 0
      %461 = vmatpush.bf16.msra.mxu0 %v449
      %462 = vmatmul.bf16.gmra.mxu0 %v439
      %v463 = vpop.f32.mrf.mxu0
      %v464 = vadd.f32 0.0, %v463
      %v465 = vpop.f32.mrf.mxu0
      %v466 = vadd.f32 0.0, %v465
      %467 = vmatmul.bf16.gmra.mxu0 %v442
      %v468 = vpop.f32.mrf.mxu0
      %v469 = vadd.f32 0.0, %v468
      %v470 = vpop.f32.mrf.mxu0
      %v471 = vadd.f32 0.0, %v470
      %472 = vdwg.mxu0
      %473 = vmatpush.bf16.msra.mxu0 0
      %474 = vmatpush.bf16.msra.mxu0 0
      %475 = vmatpush.bf16.msra.mxu0 0
      %476 = vmatpush.bf16.msra.mxu0 0
      %477 = vmatpush.bf16.msra.mxu0 0
      %478 = vmatpush.bf16.msra.mxu0 0
      %479 = vmatpush.bf16.msra.mxu0 0
      %480 = vmatpush.bf16.msra.mxu0 %v452
      %481 = vmatmul.bf16.gmra.mxu0 %v439
      %v482 = vpop.f32.mrf.mxu0
      %v483 = vadd.f32 0.0, %v482
      %v484 = vpop.f32.mrf.mxu0
      %v485 = vadd.f32 0.0, %v484
      %486 = vmatmul.bf16.gmra.mxu0 %v442
      %v487 = vpop.f32.mrf.mxu0
      %v488 = vadd.f32 0.0, %v487
      %v489 = vpop.f32.mrf.mxu0
      %v490 = vadd.f32 0.0, %v489
      %491 = vdwg.mxu0
      %v492 = vpack.c.bf16 %v483, %v464
      %v493 = vpack.c.bf16 %v485, %v466
      %v494 = vpack.c.bf16 %v488, %v469
      %v495 = vpack.c.bf16 %v490, %v471
      %497 = vset.pattern.permute.xlu0 0
      %498 = vperm.xlu0 %497, %v419
      %v499 = vpop.permute.xlu0 %498
      %v502 = vunpack.c.l.s4 839922192
      %v503 = vunpack.c.0.s8 %v502
      %v504 = vperm.slane %v499, %v503
      %506 = vset.pattern.permute.xlu0 0
      %507 = vperm.xlu0 %506, %v420
      %v508 = vpop.permute.xlu0 %507
      %v511 = vunpack.c.l.s4 839922192
      %v512 = vunpack.c.0.s8 %v511
      %v513 = vperm.slane %v508, %v512
      %515 = vset.pattern.permute.xlu0 0
      %516 = vperm.xlu0 %515, %v421
      %v517 = vpop.permute.xlu0 %516
      %v520 = vunpack.c.l.s4 839922192
      %v521 = vunpack.c.0.s8 %v520
      %v522 = vperm.slane %v517, %v521
      %524 = vset.pattern.permute.xlu0 0
      %525 = vperm.xlu0 %524, %v422
      %v526 = vpop.permute.xlu0 %525
      %v529 = vunpack.c.l.s4 839922192
      %v530 = vunpack.c.0.s8 %v529
      %v531 = vperm.slane %v526, %v530
      %v533 = vunpack.c.l.b16 %v418
      %v534 = vunpack.c.h.b16 %v418
      %v535 = vpack.c.b16 %v533, %v533
      %v536 = vpack.c.b16 %v534, %v534
      %v538 = vpack.i.b16 %v535, %v535
      %v540 = vperm.slane %v538, 0
      %v542 = vpack.i.b16 %v536, %v536
      %v544 = vperm.slane %v542, 0
      %v545 = vunpack.c.l.bf16 %v504
      %v546 = vunpack.c.l.bf16 %v513
      %v547 = vunpack.c.l.bf16 %v522
      %v548 = vunpack.c.l.bf16 %v531
      %v549 = vunpack.c.l.bf16 %v540
      %v550 = vunpack.c.l.bf16 %v544
      %v551 = vmul.f32 %v545, %v549
      %v552 = vmul.f32 %v545, %v550
      %v553 = vmul.f32 %v546, %v549
      %v554 = vmul.f32 %v546, %v550
      %v555 = vmul.f32 %v547, %v549
      %v556 = vmul.f32 %v547, %v550
      %v557 = vmul.f32 %v548, %v549
      %v558 = vmul.f32 %v548, %v550
      %v559 = vpack.c.bf16 %v552, %v551
      %v560 = vpack.c.bf16 %v554, %v553
      %v561 = vpack.c.bf16 %v556, %v555
      %v562 = vpack.c.bf16 %v558, %v557
      %v563 = vunpack.c.l.bf16 %v492
      %v564 = vunpack.c.h.bf16 %v492
      %v565 = vunpack.c.l.bf16 %v493
      %v566 = vunpack.c.h.bf16 %v493
      %v567 = vunpack.c.l.bf16 %v494
      %v568 = vunpack.c.h.bf16 %v494
      %v569 = vunpack.c.l.bf16 %v495
      %v570 = vunpack.c.h.bf16 %v495
      %v571 = vunpack.c.l.bf16 %v559
      %v572 = vunpack.c.h.bf16 %v559
      %v573 = vunpack.c.l.bf16 %v560
      %v574 = vunpack.c.h.bf16 %v560
      %v575 = vunpack.c.l.bf16 %v561
      %v576 = vunpack.c.h.bf16 %v561
      %v577 = vunpack.c.l.bf16 %v562
      %v578 = vunpack.c.h.bf16 %v562
      %v579 = vadd.f32 %v563, %v571
      %v580 = vadd.f32 %v564, %v572
      %v581 = vadd.f32 %v565, %v573
      %v582 = vadd.f32 %v566, %v574
      %v583 = vadd.f32 %v567, %v575
      %v584 = vadd.f32 %v568, %v576
      %v585 = vadd.f32 %v569, %v577
      %v586 = vadd.f32 %v570, %v578
      %v587 = vpack.c.bf16 %v580, %v579
      %v588 = vpack.c.bf16 %v582, %v581
      %v589 = vpack.c.bf16 %v584, %v583
      %v590 = vpack.c.bf16 %v586, %v585
      %v591 = vld [vmem:[%s5] sm:$0xf]
      %v592 = vld [vmem:[%s5 + $0x4] sm:$0xf]
      %v593 = vld [vmem:[%s5 + $0x8] sm:$0xf]
      %v594 = vld [vmem:[%s5 + $0xc] sm:$0xf]
      %596 = vset.pattern.permute.xlu0 0
      %597 = vperm.xlu0 %596, %v591
      %v598 = vpop.permute.xlu0 %597
      %v601 = vunpack.c.l.s4 839922192
      %v602 = vunpack.c.0.s8 %v601
      %v603 = vperm.slane %v598, %v602
      %605 = vset.pattern.permute.xlu0 0
      %606 = vperm.xlu0 %605, %v592
      %v607 = vpop.permute.xlu0 %606
      %v610 = vunpack.c.l.s4 839922192
      %v611 = vunpack.c.0.s8 %v610
      %v612 = vperm.slane %v607, %v611
      %614 = vset.pattern.permute.xlu0 0
      %615 = vperm.xlu0 %614, %v593
      %v616 = vpop.permute.xlu0 %615
      %v619 = vunpack.c.l.s4 839922192
      %v620 = vunpack.c.0.s8 %v619
      %v621 = vperm.slane %v616, %v620
      %623 = vset.pattern.permute.xlu0 0
      %624 = vperm.xlu0 %623, %v594
      %v625 = vpop.permute.xlu0 %624
      %v628 = vunpack.c.l.s4 839922192
      %v629 = vunpack.c.0.s8 %v628
      %v630 = vperm.slane %v625, %v629
      %v631 = vunpack.c.l.bf16 %v587
      %v632 = vunpack.c.h.bf16 %v587
      %v633 = vunpack.c.l.bf16 %v588
      %v634 = vunpack.c.h.bf16 %v588
      %v635 = vunpack.c.l.bf16 %v589
      %v636 = vunpack.c.h.bf16 %v589
      %v637 = vunpack.c.l.bf16 %v590
      %v638 = vunpack.c.h.bf16 %v590
      %v639 = vunpack.c.l.bf16 %v603
      %v640 = vunpack.c.l.bf16 %v612
      %v641 = vunpack.c.l.bf16 %v621
      %v642 = vunpack.c.l.bf16 %v630
      %v643 = vadd.f32 %v631, %v639
      %v644 = vadd.f32 %v632, %v639
      %v645 = vadd.f32 %v633, %v640
      %v646 = vadd.f32 %v634, %v640
      %v647 = vadd.f32 %v635, %v641
      %v648 = vadd.f32 %v636, %v641
      %v649 = vadd.f32 %v637, %v642
      %v650 = vadd.f32 %v638, %v642
      %v651 = vpack.c.bf16 %v644, %v643
      %v652 = vpack.c.bf16 %v646, %v645
      %v653 = vpack.c.bf16 %v648, %v647
      %v654 = vpack.c.bf16 %v650, %v649
      %v655 = vunpack.c.l.bf16 %v651
      %v656 = vunpack.c.h.bf16 %v651
      %v657 = vunpack.c.l.bf16 %v652
      %v658 = vunpack.c.h.bf16 %v652
      %v659 = vunpack.c.l.bf16 %v653
      %v660 = vunpack.c.h.bf16 %v653
      %v661 = vunpack.c.l.bf16 %v654
      %v662 = vunpack.c.h.bf16 %v654
      %v663 = vmul.f32 %v655, 0.20019531
      %v664 = vmul.f32 %v656, 0.20019531
      %v665 = vmul.f32 %v657, 0.20019531
      %v666 = vmul.f32 %v658, 0.20019531
      %v667 = vmul.f32 %v659, 0.20019531
      %v668 = vmul.f32 %v660, 0.20019531
      %v669 = vmul.f32 %v661, 0.20019531
      %v670 = vmul.f32 %v662, 0.20019531
      %v671 = vpack.c.bf16 %v664, %v663
      %v672 = vpack.c.bf16 %v666, %v665
      %v673 = vpack.c.bf16 %v668, %v667
      %v674 = vpack.c.bf16 %v670, %v669
      %v675 = vunpack.c.l.bf16 %v671
      %v676 = vunpack.c.h.bf16 %v671
      %v677 = vunpack.c.l.bf16 %v672
      %v678 = vunpack.c.h.bf16 %v672
      %v679 = vunpack.c.l.bf16 %v673
      %v680 = vunpack.c.h.bf16 %v673
      %v681 = vunpack.c.l.bf16 %v674
      %v682 = vunpack.c.h.bf16 %v674
      %v683 = vmax.f32 %v655, %v675
      %v684 = vmax.f32 %v656, %v676
      %v685 = vmax.f32 %v657, %v677
      %v686 = vmax.f32 %v658, %v678
      %v687 = vmax.f32 %v659, %v679
      %v688 = vmax.f32 %v660, %v680
      %v689 = vmax.f32 %v661, %v681
      %v690 = vmax.f32 %v662, %v682
      %v691 = vpack.c.bf16 %v685, %v683
      %v692 = vpack.c.bf16 %v686, %v684
      %v693 = vpack.c.bf16 %v689, %v687
      %v694 = vpack.c.bf16 %v690, %v688
      %v695 = vld [vmem:[%s3] sm:$0xf]
      %v696 = vld [vmem:[%s3 + $0x4] sm:$0xf]
      %v697 = vld [vmem:[%s3 + $0x8] sm:$0xf]
      %v698 = vld [vmem:[%s3 + $0xc] sm:$0xf]
      %v703 = vunpack.c.l.b16 %v695
      %v704 = vunpack.c.l.b16 %v696
      %v705 = vunpack.c.l.b16 %v697
      %v706 = vunpack.c.l.b16 %v698
      %v707 = vpack.c.b16 %v704, %v703
      %v708 = vpack.c.b16 %v706, %v705
      %vm709 = vcmask 261120
      %v711 = vsel %vm709, %v707, 0
      %v714 = vsel %vm709, %v708, 0
      %716 = vmatpush.bf16.msra.mxu0 0
      %717 = vmatpush.bf16.msra.mxu0 0
      %718 = vmatpush.bf16.msra.mxu0 0
      %719 = vmatpush.bf16.msra.mxu0 0
      %720 = vmatpush.bf16.msra.mxu0 0
      %721 = vmatpush.bf16.msra.mxu0 0
      %722 = vmatpush.bf16.msra.mxu0 %v693
      %723 = vmatpush.bf16.msra.mxu0 %v691
      %724 = vmatmul.bf16.gmra.mxu0 %v711
      %v725 = vpop.f32.mrf.mxu0
      %v726 = vadd.f32 0.0, %v725
      %v727 = vpop.f32.mrf.mxu0
      %v728 = vadd.f32 0.0, %v727
      %729 = vmatmul.bf16.gmra.mxu0 %v714
      %v730 = vpop.f32.mrf.mxu0
      %v731 = vadd.f32 0.0, %v730
      %v732 = vpop.f32.mrf.mxu0
      %v733 = vadd.f32 0.0, %v732
      %734 = vdwg.mxu0
      %735 = vmatpush.bf16.msra.mxu0 0
      %736 = vmatpush.bf16.msra.mxu0 0
      %737 = vmatpush.bf16.msra.mxu0 0
      %738 = vmatpush.bf16.msra.mxu0 0
      %739 = vmatpush.bf16.msra.mxu0 0
      %740 = vmatpush.bf16.msra.mxu0 0
      %741 = vmatpush.bf16.msra.mxu0 %v694
      %742 = vmatpush.bf16.msra.mxu0 %v692
      %743 = vmatmul.bf16.gmra.mxu0 %v711
      %v744 = vpop.f32.mrf.mxu0
      %v745 = vadd.f32 0.0, %v744
      %v746 = vpop.f32.mrf.mxu0
      %v747 = vadd.f32 0.0, %v746
      %748 = vmatmul.bf16.gmra.mxu0 %v714
      %v749 = vpop.f32.mrf.mxu0
      %v750 = vadd.f32 0.0, %v749
      %v751 = vpop.f32.mrf.mxu0
      %v752 = vadd.f32 0.0, %v751
      %753 = vdwg.mxu0
      %v754 = vpack.c.bf16 %v745, %v726
      %v755 = vpack.c.bf16 %v747, %v728
      %v756 = vpack.c.bf16 %v750, %v731
      %v757 = vpack.c.bf16 %v752, %v733
      %s758 = scalar_lea.vmem %s5, 16
      %v759 = vld [vmem:[%s758] sm:$0xf]
      %v760 = vld [vmem:[%s758 + $0x4] sm:$0xf]
      %v761 = vld [vmem:[%s758 + $0x8] sm:$0xf]
      %v762 = vld [vmem:[%s758 + $0xc] sm:$0xf]
      %764 = vset.pattern.permute.xlu0 0
      %765 = vperm.xlu0 %764, %v759
      %v766 = vpop.permute.xlu0 %765
      %v769 = vunpack.c.l.s4 839922192
      %v770 = vunpack.c.0.s8 %v769
      %v771 = vperm.slane %v766, %v770
      %773 = vset.pattern.permute.xlu0 0
      %774 = vperm.xlu0 %773, %v760
      %v775 = vpop.permute.xlu0 %774
      %v778 = vunpack.c.l.s4 839922192
      %v779 = vunpack.c.0.s8 %v778
      %v780 = vperm.slane %v775, %v779
      %782 = vset.pattern.permute.xlu0 0
      %783 = vperm.xlu0 %782, %v761
      %v784 = vpop.permute.xlu0 %783
      %v787 = vunpack.c.l.s4 839922192
      %v788 = vunpack.c.0.s8 %v787
      %v789 = vperm.slane %v784, %v788
      %791 = vset.pattern.permute.xlu0 0
      %792 = vperm.xlu0 %791, %v762
      %v793 = vpop.permute.xlu0 %792
      %v796 = vunpack.c.l.s4 839922192
      %v797 = vunpack.c.0.s8 %v796
      %v798 = vperm.slane %v793, %v797
      %v799 = vunpack.c.l.bf16 %v754
      %v800 = vunpack.c.h.bf16 %v754
      %v801 = vunpack.c.l.bf16 %v755
      %v802 = vunpack.c.h.bf16 %v755
      %v803 = vunpack.c.l.bf16 %v756
      %v804 = vunpack.c.h.bf16 %v756
      %v805 = vunpack.c.l.bf16 %v757
      %v806 = vunpack.c.h.bf16 %v757
      %v807 = vunpack.c.l.bf16 %v771
      %v808 = vunpack.c.l.bf16 %v780
      %v809 = vunpack.c.l.bf16 %v789
      %v810 = vunpack.c.l.bf16 %v798
      %v811 = vadd.f32 %v799, %v807
      %v812 = vadd.f32 %v800, %v807
      %v813 = vadd.f32 %v801, %v808
      %v814 = vadd.f32 %v802, %v808
      %v815 = vadd.f32 %v803, %v809
      %v816 = vadd.f32 %v804, %v809
      %v817 = vadd.f32 %v805, %v810
      %v818 = vadd.f32 %v806, %v810
      %v819 = vpack.c.bf16 %v812, %v811
      %v820 = vpack.c.bf16 %v814, %v813
      %v821 = vpack.c.bf16 %v816, %v815
      %v822 = vpack.c.bf16 %v818, %v817
      %v823 = vunpack.c.l.bf16 %v819
      %v824 = vunpack.c.h.bf16 %v819
      %v825 = vunpack.c.l.bf16 %v820
      %v826 = vunpack.c.h.bf16 %v820
      %v827 = vunpack.c.l.bf16 %v821
      %v828 = vunpack.c.h.bf16 %v821
      %v829 = vunpack.c.l.bf16 %v822
      %v830 = vunpack.c.h.bf16 %v822
      %v831 = vmul.f32 %v823, 0.20019531
      %v832 = vmul.f32 %v824, 0.20019531
      %v833 = vmul.f32 %v825, 0.20019531
      %v834 = vmul.f32 %v826, 0.20019531
      %v835 = vmul.f32 %v827, 0.20019531
      %v836 = vmul.f32 %v828, 0.20019531
      %v837 = vmul.f32 %v829, 0.20019531
      %v838 = vmul.f32 %v830, 0.20019531
      %v839 = vpack.c.bf16 %v832, %v831
      %v840 = vpack.c.bf16 %v834, %v833
      %v841 = vpack.c.bf16 %v836, %v835
      %v842 = vpack.c.bf16 %v838, %v837
      %v843 = vunpack.c.l.bf16 %v839
      %v844 = vunpack.c.h.bf16 %v839
      %v845 = vunpack.c.l.bf16 %v840
      %v846 = vunpack.c.h.bf16 %v840
      %v847 = vunpack.c.l.bf16 %v841
      %v848 = vunpack.c.h.bf16 %v841
      %v849 = vunpack.c.l.bf16 %v842
      %v850 = vunpack.c.h.bf16 %v842
      %v851 = vmax.f32 %v823, %v843
      %v852 = vmax.f32 %v824, %v844
      %v853 = vmax.f32 %v825, %v845
      %v854 = vmax.f32 %v826, %v846
      %v855 = vmax.f32 %v827, %v847
      %v856 = vmax.f32 %v828, %v848
      %v857 = vmax.f32 %v829, %v849
      %v858 = vmax.f32 %v830, %v850
      %v859 = vpack.c.bf16 %v853, %v851
      %v860 = vpack.c.bf16 %v854, %v852
      %v861 = vpack.c.bf16 %v857, %v855
      %v862 = vpack.c.bf16 %v858, %v856
      %s863 = scalar_lea.vmem %s3, 16
      %v864 = vld [vmem:[%s863] sm:$0xf]
      %v865 = vld [vmem:[%s863 + $0x4] sm:$0xf]
      %v866 = vld [vmem:[%s863 + $0x8] sm:$0xf]
      %v867 = vld [vmem:[%s863 + $0xc] sm:$0xf]
      %v872 = vunpack.c.l.b16 %v864
      %v873 = vunpack.c.l.b16 %v865
      %v874 = vunpack.c.l.b16 %v866
      %v875 = vunpack.c.l.b16 %v867
      %v876 = vpack.c.b16 %v873, %v872
      %v877 = vpack.c.b16 %v875, %v874
      %v879 = vsel %vm709, %v876, 0
      %v882 = vsel %vm709, %v877, 0
      %884 = vmatpush.bf16.msra.mxu0 0
      %885 = vmatpush.bf16.msra.mxu0 0
      %886 = vmatpush.bf16.msra.mxu0 0
      %887 = vmatpush.bf16.msra.mxu0 0
      %888 = vmatpush.bf16.msra.mxu0 0
      %889 = vmatpush.bf16.msra.mxu0 0
      %890 = vmatpush.bf16.msra.mxu0 %v861
      %891 = vmatpush.bf16.msra.mxu0 %v859
      %892 = vmatmul.bf16.gmra.mxu0 %v879
      %v893 = vpop.f32.mrf.mxu0
      %v894 = vadd.f32 0.0, %v893
      %v895 = vpop.f32.mrf.mxu0
      %v896 = vadd.f32 0.0, %v895
      %897 = vmatmul.bf16.gmra.mxu0 %v882
      %v898 = vpop.f32.mrf.mxu0
      %v899 = vadd.f32 0.0, %v898
      %v900 = vpop.f32.mrf.mxu0
      %v901 = vadd.f32 0.0, %v900
      %902 = vdwg.mxu0
      %903 = vmatpush.bf16.msra.mxu0 0
      %904 = vmatpush.bf16.msra.mxu0 0
      %905 = vmatpush.bf16.msra.mxu0 0
      %906 = vmatpush.bf16.msra.mxu0 0
      %907 = vmatpush.bf16.msra.mxu0 0
      %908 = vmatpush.bf16.msra.mxu0 0
      %909 = vmatpush.bf16.msra.mxu0 %v862
      %910 = vmatpush.bf16.msra.mxu0 %v860
      %911 = vmatmul.bf16.gmra.mxu0 %v879
      %v912 = vpop.f32.mrf.mxu0
      %v913 = vadd.f32 0.0, %v912
      %v914 = vpop.f32.mrf.mxu0
      %v915 = vadd.f32 0.0, %v914
      %916 = vmatmul.bf16.gmra.mxu0 %v882
      %v917 = vpop.f32.mrf.mxu0
      %v918 = vadd.f32 0.0, %v917
      %v919 = vpop.f32.mrf.mxu0
      %v920 = vadd.f32 0.0, %v919
      %921 = vdwg.mxu0
      %v922 = vpack.c.bf16 %v913, %v894
      %v923 = vpack.c.bf16 %v915, %v896
      %v924 = vpack.c.bf16 %v918, %v899
      %v925 = vpack.c.bf16 %v920, %v901
      %s926 = scalar_lea.vmem %s5, 32
      %v927 = vld [vmem:[%s926] sm:$0xf]
      %v928 = vld [vmem:[%s926 + $0x4] sm:$0xf]
      %v929 = vld [vmem:[%s926 + $0x8] sm:$0xf]
      %v930 = vld [vmem:[%s926 + $0xc] sm:$0xf]
      %932 = vset.pattern.permute.xlu0 0
      %933 = vperm.xlu0 %932, %v927
      %v934 = vpop.permute.xlu0 %933
      %v937 = vunpack.c.l.s4 839922192
      %v938 = vunpack.c.0.s8 %v937
      %v939 = vperm.slane %v934, %v938
      %941 = vset.pattern.permute.xlu0 0
      %942 = vperm.xlu0 %941, %v928
      %v943 = vpop.permute.xlu0 %942
      %v946 = vunpack.c.l.s4 839922192
      %v947 = vunpack.c.0.s8 %v946
      %v948 = vperm.slane %v943, %v947
      %950 = vset.pattern.permute.xlu0 0
      %951 = vperm.xlu0 %950, %v929
      %v952 = vpop.permute.xlu0 %951
      %v955 = vunpack.c.l.s4 839922192
      %v956 = vunpack.c.0.s8 %v955
      %v957 = vperm.slane %v952, %v956
      %959 = vset.pattern.permute.xlu0 0
      %960 = vperm.xlu0 %959, %v930
      %v961 = vpop.permute.xlu0 %960
      %v964 = vunpack.c.l.s4 839922192
      %v965 = vunpack.c.0.s8 %v964
      %v966 = vperm.slane %v961, %v965
      %v967 = vunpack.c.l.bf16 %v922
      %v968 = vunpack.c.h.bf16 %v922
      %v969 = vunpack.c.l.bf16 %v923
      %v970 = vunpack.c.h.bf16 %v923
      %v971 = vunpack.c.l.bf16 %v924
      %v972 = vunpack.c.h.bf16 %v924
      %v973 = vunpack.c.l.bf16 %v925
      %v974 = vunpack.c.h.bf16 %v925
      %v975 = vunpack.c.l.bf16 %v939
      %v976 = vunpack.c.l.bf16 %v948
      %v977 = vunpack.c.l.bf16 %v957
      %v978 = vunpack.c.l.bf16 %v966
      %v979 = vadd.f32 %v967, %v975
      %v980 = vadd.f32 %v968, %v975
      %v981 = vadd.f32 %v969, %v976
      %v982 = vadd.f32 %v970, %v976
      %v983 = vadd.f32 %v971, %v977
      %v984 = vadd.f32 %v972, %v977
      %v985 = vadd.f32 %v973, %v978
      %v986 = vadd.f32 %v974, %v978
      %v987 = vpack.c.bf16 %v980, %v979
      %v988 = vpack.c.bf16 %v982, %v981
      %v989 = vpack.c.bf16 %v984, %v983
      %v990 = vpack.c.bf16 %v986, %v985
      %v991 = vunpack.c.l.bf16 %v987
      %v992 = vunpack.c.h.bf16 %v987
      %v993 = vunpack.c.l.bf16 %v988
      %v994 = vunpack.c.h.bf16 %v988
      %v995 = vunpack.c.l.bf16 %v989
      %v996 = vunpack.c.h.bf16 %v989
      %v997 = vunpack.c.l.bf16 %v990
      %v998 = vunpack.c.h.bf16 %v990
      %v999 = vmul.f32 %v991, 0.20019531
      %v1000 = vmul.f32 %v992, 0.20019531
      %v1001 = vmul.f32 %v993, 0.20019531
      %v1002 = vmul.f32 %v994, 0.20019531
      %v1003 = vmul.f32 %v995, 0.20019531
      %v1004 = vmul.f32 %v996, 0.20019531
      %v1005 = vmul.f32 %v997, 0.20019531
      %v1006 = vmul.f32 %v998, 0.20019531
      %v1007 = vpack.c.bf16 %v1000, %v999
      %v1008 = vpack.c.bf16 %v1002, %v1001
      %v1009 = vpack.c.bf16 %v1004, %v1003
      %v1010 = vpack.c.bf16 %v1006, %v1005
      %v1011 = vunpack.c.l.bf16 %v1007
      %v1012 = vunpack.c.h.bf16 %v1007
      %v1013 = vunpack.c.l.bf16 %v1008
      %v1014 = vunpack.c.h.bf16 %v1008
      %v1015 = vunpack.c.l.bf16 %v1009
      %v1016 = vunpack.c.h.bf16 %v1009
      %v1017 = vunpack.c.l.bf16 %v1010
      %v1018 = vunpack.c.h.bf16 %v1010
      %v1019 = vmax.f32 %v991, %v1011
      %v1020 = vmax.f32 %v992, %v1012
      %v1021 = vmax.f32 %v993, %v1013
      %v1022 = vmax.f32 %v994, %v1014
      %v1023 = vmax.f32 %v995, %v1015
      %v1024 = vmax.f32 %v996, %v1016
      %v1025 = vmax.f32 %v997, %v1017
      %v1026 = vmax.f32 %v998, %v1018
      %v1027 = vpack.c.bf16 %v1021, %v1019
      %v1028 = vpack.c.bf16 %v1022, %v1020
      %v1029 = vpack.c.bf16 %v1025, %v1023
      %v1030 = vpack.c.bf16 %v1026, %v1024
      %s1031 = scalar_lea.vmem %s3, 32
      %v1032 = vld [vmem:[%s1031] sm:$0xf]
      %v1033 = vld [vmem:[%s1031 + $0x4] sm:$0xf]
      %v1034 = vld [vmem:[%s1031 + $0x8] sm:$0xf]
      %v1035 = vld [vmem:[%s1031 + $0xc] sm:$0xf]
      %v1040 = vunpack.c.l.b16 %v1032
      %v1041 = vunpack.c.l.b16 %v1033
      %v1042 = vunpack.c.l.b16 %v1034
      %v1043 = vunpack.c.l.b16 %v1035
      %v1044 = vpack.c.b16 %v1041, %v1040
      %v1045 = vpack.c.b16 %v1043, %v1042
      %v1047 = vsel %vm709, %v1044, 0
      %v1050 = vsel %vm709, %v1045, 0
      %1052 = vmatpush.bf16.msra.mxu0 0
      %1053 = vmatpush.bf16.msra.mxu0 0
      %1054 = vmatpush.bf16.msra.mxu0 0
      %1055 = vmatpush.bf16.msra.mxu0 0
      %1056 = vmatpush.bf16.msra.mxu0 0
      %1057 = vmatpush.bf16.msra.mxu0 0
      %1058 = vmatpush.bf16.msra.mxu0 %v1029
      %1059 = vmatpush.bf16.msra.mxu0 %v1027
      %1060 = vmatmul.bf16.gmra.mxu0 %v1047
      %v1061 = vpop.f32.mrf.mxu0
      %v1062 = vadd.f32 0.0, %v1061
      %v1063 = vpop.f32.mrf.mxu0
      %v1064 = vadd.f32 0.0, %v1063
      %1065 = vmatmul.bf16.gmra.mxu0 %v1050
      %v1066 = vpop.f32.mrf.mxu0
      %v1067 = vadd.f32 0.0, %v1066
      %v1068 = vpop.f32.mrf.mxu0
      %v1069 = vadd.f32 0.0, %v1068
      %1070 = vdwg.mxu0
      %1071 = vmatpush.bf16.msra.mxu0 0
      %1072 = vmatpush.bf16.msra.mxu0 0
      %1073 = vmatpush.bf16.msra.mxu0 0
      %1074 = vmatpush.bf16.msra.mxu0 0
      %1075 = vmatpush.bf16.msra.mxu0 0
      %1076 = vmatpush.bf16.msra.mxu0 0
      %1077 = vmatpush.bf16.msra.mxu0 %v1030
      %1078 = vmatpush.bf16.msra.mxu0 %v1028
      %1079 = vmatmul.bf16.gmra.mxu0 %v1047
      %v1080 = vpop.f32.mrf.mxu0
      %v1081 = vadd.f32 0.0, %v1080
      %v1082 = vpop.f32.mrf.mxu0
      %v1083 = vadd.f32 0.0, %v1082
      %1084 = vmatmul.bf16.gmra.mxu0 %v1050
      %v1085 = vpop.f32.mrf.mxu0
      %v1086 = vadd.f32 0.0, %v1085
      %v1087 = vpop.f32.mrf.mxu0
      %v1088 = vadd.f32 0.0, %v1087
      %1089 = vdwg.mxu0
      %v1090 = vpack.c.bf16 %v1081, %v1062
      %v1091 = vpack.c.bf16 %v1083, %v1064
      %v1092 = vpack.c.bf16 %v1086, %v1067
      %v1093 = vpack.c.bf16 %v1088, %v1069
      %s1094 = scalar_lea.vmem %s5, 48
      %v1095 = vld [vmem:[%s1094] sm:$0xf]
      %v1096 = vld [vmem:[%s1094 + $0x4] sm:$0xf]
      %v1097 = vld [vmem:[%s1094 + $0x8] sm:$0xf]
      %v1098 = vld [vmem:[%s1094 + $0xc] sm:$0xf]
      %1100 = vset.pattern.permute.xlu0 0
      %1101 = vperm.xlu0 %1100, %v1095
      %v1102 = vpop.permute.xlu0 %1101
      %v1105 = vunpack.c.l.s4 839922192
      %v1106 = vunpack.c.0.s8 %v1105
      %v1107 = vperm.slane %v1102, %v1106
      %1109 = vset.pattern.permute.xlu0 0
      %1110 = vperm.xlu0 %1109, %v1096
      %v1111 = vpop.permute.xlu0 %1110
      %v1114 = vunpack.c.l.s4 839922192
      %v1115 = vunpack.c.0.s8 %v1114
      %v1116 = vperm.slane %v1111, %v1115
      %1118 = vset.pattern.permute.xlu0 0
      %1119 = vperm.xlu0 %1118, %v1097
      %v1120 = vpop.permute.xlu0 %1119
      %v1123 = vunpack.c.l.s4 839922192
      %v1124 = vunpack.c.0.s8 %v1123
      %v1125 = vperm.slane %v1120, %v1124
      %1127 = vset.pattern.permute.xlu0 0
      %1128 = vperm.xlu0 %1127, %v1098
      %v1129 = vpop.permute.xlu0 %1128
      %v1132 = vunpack.c.l.s4 839922192
      %v1133 = vunpack.c.0.s8 %v1132
      %v1134 = vperm.slane %v1129, %v1133
      %v1135 = vunpack.c.l.bf16 %v1090
      %v1136 = vunpack.c.h.bf16 %v1090
      %v1137 = vunpack.c.l.bf16 %v1091
      %v1138 = vunpack.c.h.bf16 %v1091
      %v1139 = vunpack.c.l.bf16 %v1092
      %v1140 = vunpack.c.h.bf16 %v1092
      %v1141 = vunpack.c.l.bf16 %v1093
      %v1142 = vunpack.c.h.bf16 %v1093
      %v1143 = vunpack.c.l.bf16 %v1107
      %v1144 = vunpack.c.l.bf16 %v1116
      %v1145 = vunpack.c.l.bf16 %v1125
      %v1146 = vunpack.c.l.bf16 %v1134
      %v1147 = vadd.f32 %v1135, %v1143
      %v1148 = vadd.f32 %v1136, %v1143
      %v1149 = vadd.f32 %v1137, %v1144
      %v1150 = vadd.f32 %v1138, %v1144
      %v1151 = vadd.f32 %v1139, %v1145
      %v1152 = vadd.f32 %v1140, %v1145
      %v1153 = vadd.f32 %v1141, %v1146
      %v1154 = vadd.f32 %v1142, %v1146
      %v1155 = vpack.c.bf16 %v1148, %v1147
      %v1156 = vpack.c.bf16 %v1150, %v1149
      %v1157 = vpack.c.bf16 %v1152, %v1151
      %v1158 = vpack.c.bf16 %v1154, %v1153
      %v1159 = vunpack.c.l.bf16 %v1155
      %v1160 = vunpack.c.h.bf16 %v1155
      %v1161 = vunpack.c.l.bf16 %v1156
      %v1162 = vunpack.c.h.bf16 %v1156
      %v1163 = vunpack.c.l.bf16 %v1157
      %v1164 = vunpack.c.h.bf16 %v1157
      %v1165 = vunpack.c.l.bf16 %v1158
      %v1166 = vunpack.c.h.bf16 %v1158
      %v1167 = vmul.f32 %v1159, 0.20019531
      %v1168 = vmul.f32 %v1160, 0.20019531
      %v1169 = vmul.f32 %v1161, 0.20019531
      %v1170 = vmul.f32 %v1162, 0.20019531
      %v1171 = vmul.f32 %v1163, 0.20019531
      %v1172 = vmul.f32 %v1164, 0.20019531
      %v1173 = vmul.f32 %v1165, 0.20019531
      %v1174 = vmul.f32 %v1166, 0.20019531
      %v1175 = vpack.c.bf16 %v1168, %v1167
      %v1176 = vpack.c.bf16 %v1170, %v1169
      %v1177 = vpack.c.bf16 %v1172, %v1171
      %v1178 = vpack.c.bf16 %v1174, %v1173
      %v1179 = vunpack.c.l.bf16 %v1175
      %v1180 = vunpack.c.h.bf16 %v1175
      %v1181 = vunpack.c.l.bf16 %v1176
      %v1182 = vunpack.c.h.bf16 %v1176
      %v1183 = vunpack.c.l.bf16 %v1177
      %v1184 = vunpack.c.h.bf16 %v1177
      %v1185 = vunpack.c.l.bf16 %v1178
      %v1186 = vunpack.c.h.bf16 %v1178
      %v1187 = vmax.f32 %v1159, %v1179
      %v1188 = vmax.f32 %v1160, %v1180
      %v1189 = vmax.f32 %v1161, %v1181
      %v1190 = vmax.f32 %v1162, %v1182
      %v1191 = vmax.f32 %v1163, %v1183
      %v1192 = vmax.f32 %v1164, %v1184
      %v1193 = vmax.f32 %v1165, %v1185
      %v1194 = vmax.f32 %v1166, %v1186
      %v1195 = vpack.c.bf16 %v1189, %v1187
      %v1196 = vpack.c.bf16 %v1190, %v1188
      %v1197 = vpack.c.bf16 %v1193, %v1191
      %v1198 = vpack.c.bf16 %v1194, %v1192
      %v1199 = vld [vmem:[%s4] sm:$0xf]
      %v1200 = vld [vmem:[%s4 + $0x4] sm:$0xf]
      %v1201 = vld [vmem:[%s6] sm:$0xff]
      %v1202 = vld [vmem:[%s6 + $0x8] sm:$0xff]
      %1204 = vset.pattern.permute.xlu0 0
      %1205 = vperm.xlu0 %1204, %v1201
      %v1206 = vpop.permute.xlu0 %1205
      %1209 = vset.pattern.permute.xlu0 0
      %1210 = vperm.xlu0 %1209, %v1202
      %v1211 = vpop.permute.xlu0 %1210
      %v1215 = vunpack.c.l.b16 %v1199
      %v1216 = vunpack.c.l.b16 %v1200
      %v1217 = vpack.c.b16 %v1216, %v1215
      %v1219 = vsel %vm709, %v1217, 0
      %1221 = vmatpush.bf16.msra.mxu0 0
      %1222 = vmatpush.bf16.msra.mxu0 0
      %1223 = vmatpush.bf16.msra.mxu0 0
      %1224 = vmatpush.bf16.msra.mxu0 0
      %1225 = vmatpush.bf16.msra.mxu0 0
      %1226 = vmatpush.bf16.msra.mxu0 0
      %1227 = vmatpush.bf16.msra.mxu0 %v1197
      %1228 = vmatpush.bf16.msra.mxu0 %v1195
      %1229 = vmatmul.bf16.gmra.mxu0 %v1219
      %v1230 = vpop.f32.mrf.mxu0
      %v1231 = vadd.f32 %v1206, %v1230
      %v1232 = vpop.f32.mrf.mxu0
      %v1233 = vadd.f32 %v1211, %v1232
      %1234 = vdwg.mxu0
      %1235 = vmatpush.bf16.msra.mxu0 0
      %1236 = vmatpush.bf16.msra.mxu0 0
      %1237 = vmatpush.bf16.msra.mxu0 0
      %1238 = vmatpush.bf16.msra.mxu0 0
      %1239 = vmatpush.bf16.msra.mxu0 0
      %1240 = vmatpush.bf16.msra.mxu0 0
      %1241 = vmatpush.bf16.msra.mxu0 %v1198
      %1242 = vmatpush.bf16.msra.mxu0 %v1196
      %1243 = vmatmul.bf16.gmra.mxu0 %v1219
      %v1244 = vpop.f32.mrf.mxu0
      %v1245 = vadd.f32 %v1206, %v1244
      %v1246 = vpop.f32.mrf.mxu0
      %v1247 = vadd.f32 %v1211, %v1246
      %1248 = vdwg.mxu0
      %v1251 = vrot.slane %v1245, 4
      %vm1252 = vcmask 1043456
      %v1253 = vsel %vm1252, %v1231, %v1251
      %1255 = vst [vmem:[%s390] sm:$0x77] %v1253
      %v1258 = vrot.slane %v1247, 4
      %v1259 = vsel %vm1252, %v1233, %v1258
      %1261 = vst [vmem:[%s400] sm:$0x77] %v1259
      %s1262 = smul.u32 2, %s25
      %p1263 = scmp.lt.s32.totalorder %s24, 1
      %s1264 = scalar_select %p1263, %s24, 1
      %p1265 = scmp.lt.s32.totalorder %s1262, 1
      %s1266 = scalar_select %p1265, %s1262, 1
      %s1267 = smul.addr %s1264, 2
      %s1268 = sadd.s32 %s1266, %s1267
      %s1269 = smul.addr %s1268, 4
      %s1270 = scalar_lea.vmem %s7, %s1269
      %s1271 = smul.u32 2, %s25
      %p1272 = scmp.lt.s32.totalorder %s24, 1
      %s1273 = scalar_select %p1272, %s24, 1
      %p1274 = scmp.lt.s32.totalorder %s1271, 1
      %s1275 = scalar_select %p1274, %s1271, 1
      %s1276 = smul.addr %s1273, 2
      %s1277 = sadd.s32 %s1275, %s1276
      %s1278 = smul.addr %s1277, 4
      %s1279 = scalar_lea.vmem %s8, %s1278
      // Predicated region
      $region49: #{tpu_custom_call.1} parent=47 // pred_check
        %p1280 = pneg %p213
      $region50: #{tpu_custom_call.1} parent=47 // pred_check_branch
        %1282 = sbr.rel (%p1280) target = $region52
      $region51: #{tpu_custom_call.1} parent=47 // pred_region
        %s1283 = smul.u32 2, %s25
      $region52: #{tpu_custom_call.1} parent=47 // pred_fallthru
        _
      // Predicated region
      $region53: #{tpu_custom_call.1} parent=47 // pred_check
        %p1284 = pneg %p241
      $region54: #{tpu_custom_call.1} parent=47 // pred_check_branch
        %1286 = sbr.rel (%p1284) target = $region56
      $region55: #{tpu_custom_call.1} parent=47 // pred_region
        %s1287 = smul.u32 2, %s25
      $region56: #{tpu_custom_call.1} parent=47 // pred_fallthru
        _
    $region48: #{tpu_custom_call.1} parent=5 // pred_fallthru
      _
    %p1288 = scmp.le.s32.totalorder 2, %s15
    // Predicated region
    $region57: #{tpu_custom_call.1} parent=5 // pred_check
      %p1289 = pneg %p1288
    $region58: #{tpu_custom_call.1} parent=5 // pred_check_branch
      %1291 = sbr.rel (%p1289) target = $region60
    $region59: #{tpu_custom_call.1} parent=5 // pred_region
      %s1292 = ssub.s32 %s15, 2
      // Predicated region
      $region61: #{tpu_custom_call.1} parent=59 // pred_check
        %p1293 = pneg %p219
      $region62: #{tpu_custom_call.1} parent=59 // pred_check_branch
        %1295 = sbr.rel (%p1293) target = $region64
      $region63: #{tpu_custom_call.1} parent=59 // pred_region
        %s1296 = smul.u32 2, %s27
        %p1297 = scmp.lt.s32.totalorder %s26, 1
        %s1298 = scalar_select %p1297, %s26, 1
        %p1299 = scmp.lt.s32.totalorder %s1296, 1
        %s1300 = scalar_select %p1299, %s1296, 1
        %s1301 = smul.addr %s1298, 2
        %s1302 = sadd.s32 %s1300, %s1301
        %s1303 = smul.addr %s1302, 4
        %s1304 = scalar_lea.vmem %s7, %s1303
      $region64: #{tpu_custom_call.1} parent=59 // pred_fallthru
        _
      // Predicated region
      $region65: #{tpu_custom_call.1} parent=59 // pred_check
        %p1305 = pneg %p247
      $region66: #{tpu_custom_call.1} parent=59 // pred_check_branch
        %1307 = sbr.rel (%p1305) target = $region68
      $region67: #{tpu_custom_call.1} parent=59 // pred_region
        %s1308 = smul.u32 2, %s27
        %p1309 = scmp.lt.s32.totalorder %s26, 1
        %s1310 = scalar_select %p1309, %s26, 1
        %p1311 = scmp.lt.s32.totalorder %s1308, 1
        %s1312 = scalar_select %p1311, %s1308, 1
        %s1313 = smul.addr %s1310, 2
        %s1314 = sadd.s32 %s1312, %s1313
        %s1315 = smul.addr %s1314, 4
        %s1316 = scalar_lea.vmem %s8, %s1315
      $region68: #{tpu_custom_call.1} parent=59 // pred_fallthru
        _
    $region60: #{tpu_custom_call.1} parent=5 // pred_fallthru
      _
  $region6: #{tpu_custom_call.1} parent=0 // loop_footer
    %s19 = sadd.s32 1, %s15
  $region7: #{tpu_custom_call.1} parent=0 // loop_footer_branch
    %14 = sbr.rel target = $region3
  $region8: #{tpu_custom_call.1} parent=0 // loop_exit
    _

</llo_original>
